<compile_context>
chip_gen: v6e
topology: v6e:2x2x1
jax: 0.10.0
libtpu: 0.0.40
codegen_flags: <defaults>
</compile_context>

<pallas_src>
import functools

import numpy as np
import jax
import jax.numpy as jnp
from jax.experimental import pallas as pl
from jax.experimental.pallas import tpu as pltpu

BT601_RGB2YUV_MAT = np.array(
    [[0.299, 0.587, 0.114],
     [-0.168736, -0.331264, 0.5],
     [0.5, -0.418688, -0.081312]],
    dtype=np.float32,
)


def _round_up(x, m):
    return ((x + m - 1) // m) * m


def _rgb2yuv_kernel(x_ref, o_ref, *, mat, off):
    # x_ref / o_ref: (1, 3, tile_r, 128) f32 in VMEM.
    # mat / off are Python float constants baked in at trace time.
    r = x_ref[0, 0, :, :]
    g = x_ref[0, 1, :, :]
    b = x_ref[0, 2, :, :]
    for d in range(3):  # 3 channels, static -> unrolled
        o_ref[0, d, :, :] = (
            mat[d][0] * r + mat[d][1] * g + mat[d][2] * b + off[d]
        )


def rgb2yuv(x, bit_depth=8, max_tile_rows=512):
    """x: (B, 3, H, W) float in [0, 255] (or [0, 1023] for 10-bit). Returns f32 YUV."""
    B, C, H, W = x.shape
    assert C == 3, "RGB2YUV expects 3 input channels"
    x = x.astype(jnp.float32)

    # Flatten spatial dims, pad to a multiple of (tile_r * 128), reshape to
    # (B, 3, rows, 128) so the lane dim is always a full, unmasked 128.
    N = H * W
    rows = -(-N // 128)                              # cdiv(N, 128)
    tile_r = min(max_tile_rows, _round_up(rows, 8))  # sublane dim multiple of 8
    rows_pad = _round_up(rows, tile_r)
    N_pad = rows_pad * 128

    xf = x.reshape(B, 3, N)
    if N_pad != N:
        xf = jnp.pad(xf, ((0, 0), (0, 0), (0, N_pad - N)))
    xr = xf.reshape(B, 3, rows_pad, 128)

    # Trace-time constants (no SMEM traffic, no per-iter scalar broadcasts).
    mat = tuple(tuple(float(v) for v in row) for row in BT601_RGB2YUV_MAT)
    uv = 512.0 if bit_depth == 10 else 128.0
    off = (0.0, uv, uv)

    kernel = functools.partial(_rgb2yuv_kernel, mat=mat, off=off)
    grid = (B, rows_pad // tile_r)

    block = pl.BlockSpec((1, 3, tile_r, 128), lambda b, t: (b, 0, t, 0))
    out = pl.pallas_call(
        kernel,
        out_shape=jax.ShapeDtypeStruct((B, 3, rows_pad, 128), jnp.float32),
        grid_spec=pltpu.PrefetchScalarGridSpec(
            num_scalar_prefetch=0,
            grid=grid,
            in_specs=[block],
            out_specs=block,
        ),
        compiler_params=pltpu.CompilerParams(
            dimension_semantics=("parallel", "parallel"),
        ),
    )(xr)

    # TODO(synk): the PyTorch module does not clamp/round to the bit-depth range,
    # so neither do we.
    return out.reshape(B, 3, N_pad)[:, :, :N].reshape(B, 3, H, W)


def _reference(x, bit_depth=8):
    mat = jnp.asarray(BT601_RGB2YUV_MAT, dtype=jnp.float32)
    uv = 512.0 if bit_depth == 10 else 128.0
    offset = jnp.array([0.0, uv, uv], dtype=jnp.float32)
    yuv = jnp.einsum('bchw,cd->bdhw', x.astype(jnp.float32), mat.T)
    return yuv + offset.reshape(1, 3, 1, 1)


if __name__ == "__main__":
    key = jax.random.PRNGKey(0)

    # Small primary test (matches the module's expected layout).
    B, C, H, W = 2, 3, 16, 16
    x = jax.random.uniform(key, (B, C, H, W), dtype=jnp.float32) * 255.0
    out = jax.block_until_ready(rgb2yuv(x, bit_depth=8))
    ref = _reference(x, bit_depth=8)
    np.testing.assert_allclose(np.asarray(out), np.asarray(ref), rtol=1e-5, atol=1e-3)

    # Ragged spatial size (exercises the pad/slice path) + 10-bit offsets.
    key2 = jax.random.PRNGKey(1)
    x2 = jax.random.uniform(key2, (2, 3, 17, 23), dtype=jnp.float32) * 1023.0
    out2 = jax.block_until_ready(rgb2yuv(x2, bit_depth=10))
    ref2 = _reference(x2, bit_depth=10)
    np.testing.assert_allclose(np.asarray(out2), np.asarray(ref2), rtol=1e-5, atol=1e-3)

    print("KERNEL_OK")
</pallas_src>

<mosaic_0001>
module attributes {stable_mosaic.version = 11 : i64} {
  func.func @_rgb2yuv_kernel(%arg0: i32, %arg1: i32, %arg2: memref<1x3x8x128xf32, #tpu.memory_space<vmem>>, %arg3: memref<1x3x8x128xf32, #tpu.memory_space<vmem>>) attributes {dimension_semantics = [#tpu.dimension_semantics<parallel>, #tpu.dimension_semantics<parallel>], iteration_bounds = array<i64: 2, 1>, scalar_prefetch = 0 : i64, scratch_operands = 0 : i64, tpu.core_type = #tpu.core_type<tc>, window_params = [{transform_indices = @transform_0, window_bounds = array<i64: 1, 3, 8, 128>}, {transform_indices = @transform_1, window_bounds = array<i64: 1, 3, 8, 128>}]} {
    %c0 = arith.constant 0 : index
    %c0_0 = arith.constant 0 : index
    %c0_1 = arith.constant 0 : index
    %c0_2 = arith.constant 0 : index
    %0 = vector.load %arg2[%c0, %c0_0, %c0_1, %c0_2] : memref<1x3x8x128xf32, #tpu.memory_space<vmem>>, vector<1x1x8x128xf32>
    %1 = vector.shape_cast %0 : vector<1x1x8x128xf32> to vector<8x128xf32>
    %c0_3 = arith.constant 0 : index
    %c1 = arith.constant 1 : index
    %c0_4 = arith.constant 0 : index
    %c0_5 = arith.constant 0 : index
    %2 = vector.load %arg2[%c0_3, %c1, %c0_4, %c0_5] : memref<1x3x8x128xf32, #tpu.memory_space<vmem>>, vector<1x1x8x128xf32>
    %3 = vector.shape_cast %2 : vector<1x1x8x128xf32> to vector<8x128xf32>
    %c0_6 = arith.constant 0 : index
    %c2 = arith.constant 2 : index
    %c0_7 = arith.constant 0 : index
    %c0_8 = arith.constant 0 : index
    %4 = vector.load %arg2[%c0_6, %c2, %c0_7, %c0_8] : memref<1x3x8x128xf32, #tpu.memory_space<vmem>>, vector<1x1x8x128xf32>
    %5 = vector.shape_cast %4 : vector<1x1x8x128xf32> to vector<8x128xf32>
    %cst = arith.constant 2.990000e-01 : f32
    %6 = vector.broadcast %cst : f32 to vector<8x128xf32>
    %7 = arith.mulf %6, %1 : vector<8x128xf32>
    %cst_9 = arith.constant 5.870000e-01 : f32
    %8 = vector.broadcast %cst_9 : f32 to vector<8x128xf32>
    %9 = arith.mulf %8, %3 : vector<8x128xf32>
    %10 = arith.addf %7, %9 : vector<8x128xf32>
    %cst_10 = arith.constant 1.140000e-01 : f32
    %11 = vector.broadcast %cst_10 : f32 to vector<8x128xf32>
    %12 = arith.mulf %11, %5 : vector<8x128xf32>
    %13 = arith.addf %10, %12 : vector<8x128xf32>
    %cst_11 = arith.constant 0.000000e+00 : f32
    %14 = vector.broadcast %cst_11 : f32 to vector<8x128xf32>
    %15 = arith.addf %13, %14 : vector<8x128xf32>
    %c0_12 = arith.constant 0 : index
    %c0_13 = arith.constant 0 : index
    %c0_14 = arith.constant 0 : index
    %c0_15 = arith.constant 0 : index
    %16 = vector.load %arg3[%c0_12, %c0_13, %c0_14, %c0_15] : memref<1x3x8x128xf32, #tpu.memory_space<vmem>>, vector<1x1x8x128xf32>
    %17 = vector.shape_cast %16 : vector<1x1x8x128xf32> to vector<8x128xf32>
    %18 = vector.shape_cast %15 : vector<8x128xf32> to vector<1x1x8x128xf32>
    tpu.vector_store %arg3[%c0_12, %c0_13, %c0_14, %c0_15], %18 {strides = array<i32>} : memref<1x3x8x128xf32, #tpu.memory_space<vmem>>, vector<1x1x8x128xf32>,
    %cst_16 = arith.constant -1.687360e-01 : f32
    %19 = vector.broadcast %cst_16 : f32 to vector<8x128xf32>
    %20 = arith.mulf %19, %1 : vector<8x128xf32>
    %cst_17 = arith.constant -3.312640e-01 : f32
    %21 = vector.broadcast %cst_17 : f32 to vector<8x128xf32>
    %22 = arith.mulf %21, %3 : vector<8x128xf32>
    %23 = arith.addf %20, %22 : vector<8x128xf32>
    %cst_18 = arith.constant 5.000000e-01 : f32
    %24 = vector.broadcast %cst_18 : f32 to vector<8x128xf32>
    %25 = arith.mulf %24, %5 : vector<8x128xf32>
    %26 = arith.addf %23, %25 : vector<8x128xf32>
    %cst_19 = arith.constant 1.280000e+02 : f32
    %27 = vector.broadcast %cst_19 : f32 to vector<8x128xf32>
    %28 = arith.addf %26, %27 : vector<8x128xf32>
    %c0_20 = arith.constant 0 : index
    %c1_21 = arith.constant 1 : index
    %c0_22 = arith.constant 0 : index
    %c0_23 = arith.constant 0 : index
    %29 = vector.load %arg3[%c0_20, %c1_21, %c0_22, %c0_23] : memref<1x3x8x128xf32, #tpu.memory_space<vmem>>, vector<1x1x8x128xf32>
    %30 = vector.shape_cast %29 : vector<1x1x8x128xf32> to vector<8x128xf32>
    %31 = vector.shape_cast %28 : vector<8x128xf32> to vector<1x1x8x128xf32>
    tpu.vector_store %arg3[%c0_20, %c1_21, %c0_22, %c0_23], %31 {strides = array<i32>} : memref<1x3x8x128xf32, #tpu.memory_space<vmem>>, vector<1x1x8x128xf32>,
    %cst_24 = arith.constant 5.000000e-01 : f32
    %32 = vector.broadcast %cst_24 : f32 to vector<8x128xf32>
    %33 = arith.mulf %32, %1 : vector<8x128xf32>
    %cst_25 = arith.constant -4.186880e-01 : f32
    %34 = vector.broadcast %cst_25 : f32 to vector<8x128xf32>
    %35 = arith.mulf %34, %3 : vector<8x128xf32>
    %36 = arith.addf %33, %35 : vector<8x128xf32>
    %cst_26 = arith.constant -8.131200e-02 : f32
    %37 = vector.broadcast %cst_26 : f32 to vector<8x128xf32>
    %38 = arith.mulf %37, %5 : vector<8x128xf32>
    %39 = arith.addf %36, %38 : vector<8x128xf32>
    %cst_27 = arith.constant 1.280000e+02 : f32
    %40 = vector.broadcast %cst_27 : f32 to vector<8x128xf32>
    %41 = arith.addf %39, %40 : vector<8x128xf32>
    %c0_28 = arith.constant 0 : index
    %c2_29 = arith.constant 2 : index
    %c0_30 = arith.constant 0 : index
    %c0_31 = arith.constant 0 : index
    %42 = vector.load %arg3[%c0_28, %c2_29, %c0_30, %c0_31] : memref<1x3x8x128xf32, #tpu.memory_space<vmem>>, vector<1x1x8x128xf32>
    %43 = vector.shape_cast %42 : vector<1x1x8x128xf32> to vector<8x128xf32>
    %44 = vector.shape_cast %41 : vector<8x128xf32> to vector<1x1x8x128xf32>
    tpu.vector_store %arg3[%c0_28, %c2_29, %c0_30, %c0_31], %44 {strides = array<i32>} : memref<1x3x8x128xf32, #tpu.memory_space<vmem>>, vector<1x1x8x128xf32>,
    return
  }
  func.func @transform_0(%arg0: i32, %arg1: i32) -> (i32, i32, i32, i32) {
    %c0_i32 = arith.constant 0 : i32
    %c0_i32_0 = arith.constant 0 : i32
    %c0_i32_1 = arith.constant 0 : i32
    return %arg0, %c0_i32, %arg1, %c0_i32_0 : i32, i32, i32, i32
  }
  func.func @transform_1(%arg0: i32, %arg1: i32) -> (i32, i32, i32, i32) {
    %c0_i32 = arith.constant 0 : i32
    %c0_i32_0 = arith.constant 0 : i32
    %c0_i32_1 = arith.constant 0 : i32
    return %arg0, %c0_i32, %arg1, %c0_i32_0 : i32, i32, i32, i32
  }
}

</mosaic_0001>

<llo_original>
// kernel: tpu_custom_call.1
$region0: #{tpu_custom_call.1}
  #allocation0 [shape = 'u32[]', space=smem, size = 0x4, offset = 0x4, fixed_abs, tag = 'smem constant byte address 0x4 - core index']
  #allocation1 [shape = 'u32[144,128]{1,0:T(1,128)}', space=vmem, size = 0x12000, scoped, tag = 'internal scratch']
  %s0 = inlined_call_operand.hbm [shape: f32[2,3,8,128], index: 0, kind: input, shape index: {}]
  %s1 = inlined_call_operand.hbm [shape: f32[2,3,8,128], index: 1, kind: output, shape index: {}]
  %s2 = sld [smem:[#allocation0]]
  $region41: #{tpu_custom_call.1} parent=0
    _
  %s4 = ssub.s32 1, %s2
  %s5 = scalar_select 0, %s4, %s2
  $region1: #{tpu_custom_call.1} parent=0
    #allocation2 [shape = 'u8[24576]{0}', space=vmem, size = 0x6000, scoped, tag = 'input window, operand 0']
    #allocation3 [shape = 's32[2]{0}', space=sflag, size = 0x8, scoped, tag = 'scoped memory for tpu_custom_call.1']
    #allocation4 [shape = 's32[2]{0}', space=sflag, size = 0x8, scoped, tag = 'scoped memory for tpu_custom_call.1']
    #allocation5 [shape = 'u8[24576]{0}', space=vmem, size = 0x6000, scoped, tag = 'output window, operand 0']
    %6 = vsyncpa [#allocation3], 0
    %s7 = scalar_lea.sflag [#allocation3], 1
    %8 = vsyncpa %s7, 0
    %9 = vsyncpa [#allocation4], 0
    %s10 = scalar_lea.sflag [#allocation4], 1
    %11 = vsyncpa %s10, 0
    loop: start=0, step=1, limit=4
    $region2: #{tpu_custom_call.1} parent=1 // loop_pre_header
      _
    $region3: #{tpu_custom_call.1} parent=1 // loop_header
      %s13 = sphi 0, %s17
      %p14 = scmp.ge.s32.totalorder %s13, 4
      %s20 = sphi 0, %s32
      %s21 = sphi 0, %s28
      %s22 = sphi 0, %s20
      %s23 = sphi 0, %s21
      %s24 = sphi 0, %s22
      %s25 = sphi 0, %s23
      %s37 = sphi 0, %s39
      %s40 = sphi 0, %s37
      %s41 = sphi 0, %s40
      %s57 = sphi 0, %s41
      %s65 = sphi 0, %s67
      %s68 = sphi 0, %s65
      %s69 = sphi 0, %s68
      %s85 = sphi 0, %s69
    $region4: #{tpu_custom_call.1} parent=1 // loop_header_branch
      %16 = sbr.rel (%p14) target = $region8
    $region5: #{tpu_custom_call.1} parent=1 // loop_body
      %s18 = ssub.s32 %s13, 1
      %s19 = ssub.s32 %s13, 2
      %s26 = sadd.s32 1, %s21
      %p27 = scmp.ge.s32.totalorder %s26, 1
      %s28 = scalar_select %p27, 0, %s26
      %s29 = sadd.s32 1, %s20
      %s30 = scalar_select %p27, %s29, %s20
      %p31 = scmp.ge.s32.totalorder %s30, 2
      %s32 = scalar_select %p31, 0, %s30
      %s33 = ssub.s32 %s20, %s32
      %s34 = ssub.s32 %s21, %s28
      %s35 = sor.u32 %s33, %s34
      %p36 = scmp.eq.s32.totalorder %s35, 0
      %s38 = sadd.s32 %s37, 1
      %s39 = scalar_select %p36, %s37, %s38
      %p42 = pneg %p36
      %p43 = scmp.eq.s32.totalorder %s13, 1
      %p44 = por %p42, %p43
      %p45 = scmp.ne.s32.totalorder %s37, %s40
      %p46 = scmp.eq.s32.totalorder %s13, 0
      %p47 = por %p45, %p46
      %p48 = scmp.ne.s32.totalorder %s37, %s40
      %p49 = scmp.eq.s32.totalorder %s18, 1
      %p50 = por %p48, %p49
      %p51 = scmp.ne.s32.totalorder %s40, %s41
      %p52 = scmp.eq.s32.totalorder %s18, 0
      %p53 = por %p51, %p52
      %p54 = scmp.ne.s32.totalorder %s40, %s41
      %p55 = scmp.eq.s32.totalorder %s19, 1
      %p56 = por %p54, %p55
      %p58 = scmp.ne.s32.totalorder %s41, %s57
      %p59 = scmp.eq.s32.totalorder %s19, 0
      %p60 = por %p58, %p59
      %s61 = ssub.s32 %s20, %s32
      %s62 = ssub.s32 %s21, %s28
      %s63 = sor.u32 %s61, %s62
      %p64 = scmp.eq.s32.totalorder %s63, 0
      %s66 = sadd.s32 %s65, 1
      %s67 = scalar_select %p64, %s65, %s66
      %p70 = pneg %p64
      %p71 = scmp.eq.s32.totalorder %s13, 1
      %p72 = por %p70, %p71
      %p73 = scmp.ne.s32.totalorder %s65, %s68
      %p74 = scmp.eq.s32.totalorder %s13, 0
      %p75 = por %p73, %p74
      %p76 = scmp.ne.s32.totalorder %s65, %s68
      %p77 = scmp.eq.s32.totalorder %s18, 1
      %p78 = por %p76, %p77
      %p79 = scmp.ne.s32.totalorder %s68, %s69
      %p80 = scmp.eq.s32.totalorder %s18, 0
      %p81 = por %p79, %p80
      %p82 = scmp.ne.s32.totalorder %s68, %s69
      %p83 = scmp.eq.s32.totalorder %s19, 1
      %p84 = por %p82, %p83
      %p86 = scmp.ne.s32.totalorder %s69, %s85
      %p87 = scmp.eq.s32.totalorder %s19, 0
      %p88 = por %p86, %p87
      %p89 = scmp.le.s32.totalorder 1, %s13
      %p90 = scmp.lt.s32.totalorder %s13, 3
      %p91 = pnand %p89, %p90
      %p92 = pneg %p91
      // Predicated region
      $region9: #{tpu_custom_call.1} parent=5 // pred_check
        _
      $region10: #{tpu_custom_call.1} parent=5 // pred_check_branch
        %94 = sbr.rel (%p91) target = $region12
      $region11: #{tpu_custom_call.1} parent=5 // pred_region
        %s95 = ssub.s32 %s13, 1
      $region12: #{tpu_custom_call.1} parent=5 // pred_fallthru
        _
      %p96 = scmp.lt.s32.totalorder %s13, 2
      // Predicated region
      $region13: #{tpu_custom_call.1} parent=5 // pred_check
        %p97 = pneg %p96
      $region14: #{tpu_custom_call.1} parent=5 // pred_check_branch
        %99 = sbr.rel (%p97) target = $region16
      $region15: #{tpu_custom_call.1} parent=5 // pred_region
        // Predicated region
        $region17: #{tpu_custom_call.1} parent=15 // pred_check
          %p100 = pneg %p47
        $region18: #{tpu_custom_call.1} parent=15 // pred_check_branch
          %102 = sbr.rel (%p100) target = $region20
        $region19: #{tpu_custom_call.1} parent=15 // pred_region
          %s103 = sand.u32 %s37, 1
          %s104 = scalar_lea.sflag [#allocation3], %s103
          %s105 = sand.u32 %s37, 1
          %s106 = smul.addr %s105, 24
          %s107 = scalar_lea.vmem [#allocation2], %s106
          %s109 = ssub.s32 384, 384
          %110 = vsyncadd %s104, %s109
          %s111 = smul.addr %s20, 3
          %s112 = sadd.s32 %s21, %s111
          %s113 = smul.addr %s112, 128
          %s114 = scalar_lea.hbm %s0, %s113
          %s115 = sshll.u32 %s107, 4
          %s116 = int_to_ptr.vmem [resolvable:$true] %s115
          %121 = dma.hbm_to_vmem [thread:$0]  %s114, 384, %s116, %s104, 128, 128, 8
        $region20: #{tpu_custom_call.1} parent=15 // pred_fallthru
          _
      $region16: #{tpu_custom_call.1} parent=5 // pred_fallthru
        _
      %p122 = scmp.le.s32.totalorder 1, %s13
      %p123 = scmp.lt.s32.totalorder %s13, 3
      %p124 = pnand %p122, %p123
      %p125 = pneg %p124
      // Predicated region
      $region21: #{tpu_custom_call.1} parent=5 // pred_check
        _
      $region22: #{tpu_custom_call.1} parent=5 // pred_check_branch
        %127 = sbr.rel (%p124) target = $region24
      $region23: #{tpu_custom_call.1} parent=5 // pred_region
        %s128 = ssub.s32 %s13, 1
        %s129 = sand.u32 %s40, 1
        %s130 = scalar_lea.sflag [#allocation3], %s129
        %s131 = sand.u32 %s40, 1
        %s132 = smul.addr %s131, 24
        %s133 = scalar_lea.vmem [#allocation2], %s132
        // Predicated region
        $region25: #{tpu_custom_call.1} parent=23 // pred_check
          %p134 = pneg %p53
        $region26: #{tpu_custom_call.1} parent=23 // pred_check_branch
          %136 = sbr.rel (%p134) target = $region28
        $region27: #{tpu_custom_call.1} parent=23 // pred_region
          %137 = dma.done %s130, 384
        $region28: #{tpu_custom_call.1} parent=23 // pred_fallthru
          _
        %s138 = sand.u32 %s40, 1
        %s139 = scalar_lea.sflag [#allocation3], %s138
        %s140 = sand.u32 %s40, 1
        %s141 = smul.addr %s140, 24
        %s142 = scalar_lea.vmem [#allocation2], %s141
        %p143 = pneg %p53
        %p144 = pneg %p50
        %p145 = pneg %p81
        %p146 = pneg %p78
        %s147 = sand.u32 %s68, 1
        %s148 = scalar_lea.sflag [#allocation4], %s147
        %s149 = sand.u32 %s68, 1
        %s150 = smul.addr %s149, 24
        %s151 = scalar_lea.vmem [#allocation5], %s150
        %v152 = vld [vmem:[%s133] sm:$0xff]
        %s153 = scalar_lea.vmem %s133, 8 [#allocation2]
        %v154 = vld [vmem:[%s153] sm:$0xff]
        %s155 = scalar_lea.vmem %s133, 16 [#allocation2]
        %v156 = vld [vmem:[%s155] sm:$0xff]
        %v157 = vmul.f32 %v152, 0.299
        %v158 = vmul.f32 %v154, 0.587
        %v159 = vadd.f32 %v157, %v158
        %v160 = vmul.f32 %v156, 0.114
        %v161 = vadd.f32 %v159, %v160
        %v162 = vadd.f32 %v161, 0.0
        %163 = vst [vmem:[%s151] sm:$0xff] %v162
        %v164 = vmul.f32 %v152, -0.168736
        %v165 = vmul.f32 %v154, -0.331264
        %v166 = vadd.f32 %v164, %v165
        %v167 = vmul.f32 %v156, 0.5
        %v168 = vadd.f32 %v166, %v167
        %v169 = vadd.f32 %v168, 128.0
        %s170 = scalar_lea.vmem %s151, 8 [#allocation5]
        %171 = vst [vmem:[%s170] sm:$0xff] %v169
        %v172 = vmul.f32 %v152, 0.5
        %v173 = vmul.f32 %v154, -0.418688
        %v174 = vadd.f32 %v172, %v173
        %v175 = vmul.f32 %v156, -0.081312
        %v176 = vadd.f32 %v174, %v175
        %v177 = vadd.f32 %v176, 128.0
        %s178 = scalar_lea.vmem %s151, 16 [#allocation5]
        %179 = vst [vmem:[%s178] sm:$0xff] %v177
        %s180 = sand.u32 %s68, 1
        %s181 = scalar_lea.sflag [#allocation4], %s180
        %s182 = sand.u32 %s68, 1
        %s183 = smul.addr %s182, 24
        %s184 = scalar_lea.vmem [#allocation5], %s183
        // Predicated region
        $region29: #{tpu_custom_call.1} parent=23 // pred_check
          %p185 = pneg %p78
        $region30: #{tpu_custom_call.1} parent=23 // pred_check_branch
          %187 = sbr.rel (%p185) target = $region32
        $region31: #{tpu_custom_call.1} parent=23 // pred_region
          %s189 = ssub.s32 384, 384
          %190 = vsyncadd %s181, %s189
          %s191 = smul.addr %s22, 3
          %s192 = sadd.s32 %s23, %s191
          %s193 = smul.addr %s192, 128
          %s194 = scalar_lea.hbm %s1, %s193
          %s195 = sshll.u32 %s184, 4
          %s196 = int_to_ptr.vmem [resolvable:$true] %s195
          %201 = dma.vmem_to_hbm [thread:$0]  %s196, 384, %s194, %s181, 128, 128, 8
        $region32: #{tpu_custom_call.1} parent=23 // pred_fallthru
          _
      $region24: #{tpu_custom_call.1} parent=5 // pred_fallthru
        _
      %p202 = scmp.le.s32.totalorder 2, %s13
      // Predicated region
      $region33: #{tpu_custom_call.1} parent=5 // pred_check
        %p203 = pneg %p202
      $region34: #{tpu_custom_call.1} parent=5 // pred_check_branch
        %205 = sbr.rel (%p203) target = $region36
      $region35: #{tpu_custom_call.1} parent=5 // pred_region
        %s206 = ssub.s32 %s13, 2
        // Predicated region
        $region37: #{tpu_custom_call.1} parent=35 // pred_check
          %p207 = pneg %p84
        $region38: #{tpu_custom_call.1} parent=35 // pred_check_branch
          %209 = sbr.rel (%p207) target = $region40
        $region39: #{tpu_custom_call.1} parent=35 // pred_region
          %s210 = sand.u32 %s69, 1
          %s211 = scalar_lea.sflag [#allocation4], %s210
          %s212 = sand.u32 %s69, 1
          %s213 = smul.addr %s212, 24
          %s214 = scalar_lea.vmem [#allocation5], %s213
          %215 = dma.done %s211, 384
        $region40: #{tpu_custom_call.1} parent=35 // pred_fallthru
          _
      $region36: #{tpu_custom_call.1} parent=5 // pred_fallthru
        _
    $region6: #{tpu_custom_call.1} parent=1 // loop_footer
      %s17 = sadd.s32 1, %s13
    $region7: #{tpu_custom_call.1} parent=1 // loop_footer_branch
      %12 = sbr.rel target = $region3
    $region8: #{tpu_custom_call.1} parent=1 // loop_exit
      _
    %216 = vsyncpa [#allocation3], 1
    %s217 = scalar_lea.sflag [#allocation3], 1
    %218 = vsyncpa %s217, 1
    %219 = vsyncpa [#allocation4], 1
    %s220 = scalar_lea.sflag [#allocation4], 1
    %221 = vsyncpa %s220, 1

</llo_original>
